<compile_context>
chip_gen: v5e
topology: v5e:2x2
jax: 0.10.0
libtpu: 0.0.40
codegen_flags: <defaults>
</compile_context>

<pallas_src>
import jax
import jax.numpy as jnp
from jax.experimental import pallas as pl
from jax.experimental.pallas import tpu as pltpu


def _corner_mix_kernel(xr_ref, xi_ref, wr_ref, wi_ref, or_ref, oi_ref):
    """xr/xi: (Bt, I, Mt) f32; wr/wi: (I, To, Mt) bf16; or/oi: (Bt, To, Mt) f32."""
    bt, t_o, t_m = or_ref.shape
    n_in = wr_ref.shape[0]

    def body(i, carry):
        acc_r, acc_i = carry
        # Cast the bf16 weight slice to f32 once per input channel; the cost is
        # amortized over the Bt batch elements handled in the inner loop below.
        wr_i = wr_ref[i].astype(jnp.float32)           # (To, Mt)
        wi_i = wi_ref[i].astype(jnp.float32)
        new_r, new_i = [], []
        for b in range(bt):                            # static, small (<= 4)
            # One explicit broadcast of the (1, Mt) activation row per plane so
            # the four multiplies see full (To, Mt) operands.
            xr_b = jnp.broadcast_to(xr_ref[b, pl.ds(i, 1), :], (t_o, t_m))
            xi_b = jnp.broadcast_to(xi_ref[b, pl.ds(i, 1), :], (t_o, t_m))
            # Plain 4-multiply complex product (VALU-cheapest form here).
            new_r.append(acc_r[b] + (wr_i * xr_b - wi_i * xi_b))
            new_i.append(acc_i[b] + (wr_i * xi_b + wi_i * xr_b))
        return tuple(new_r), tuple(new_i)

    zero = jnp.zeros((t_o, t_m), jnp.float32)
    init = (tuple(zero for _ in range(bt)), tuple(zero for _ in range(bt)))
    # Capped unroll: enough ILP for the scheduler without blowing up vreg
    # pressure / code size when in_channels is large.
    acc_r, acc_i = jax.lax.fori_loop(0, n_in, body, init, unroll=min(8, n_in))

    for b in range(bt):
        or_ref[b, :, :] = acc_r[b]
        oi_ref[b, :, :] = acc_i[b]


def _vmem_capacity_bytes():
    """Trace-time VMEM capacity query; conservative (v7x, 64 MiB) fallback."""
    try:
        cap = int(pltpu.get_tpu_info().vmem_capacity_bytes)
        if cap > 0:
            return cap
    except Exception:
        pass
    return 64 * 1024 * 1024


def _choose_tiles(in_ch, out_ch, batch, n_modes, vmem_cap):
    """Pick lane (M), output-channel (O) and batch tiles, generation-aware."""
    ru = lambda v, k: ((v + k - 1) // k) * k

    # Scoped VMEM limit: ~3/4 of physical (48 MiB on v7x, 96 MiB on v5e/v6e).
    vmem_limit = max(32 * 1024 * 1024, min(100 * 1024 * 1024, (vmem_cap * 3) // 4))
    stream_budget = max(8 * 1024 * 1024, vmem_limit - 12 * 1024 * 1024)

    # Lane tile: prefer 512; for small mode counts use one full-extent tile so
    # the zero padding does not inflate weight bytes.
    mp128 = ru(n_modes, 128)
    if mp128 <= 512:
        mt, mp = mp128, mp128
    else:
        mt, mp = 512, ru(n_modes, 512)

    op = ru(out_ch, 8)

    # Batch tile: amortizes per-i weight casts, weight-block residency and
    # per-grid-step overhead.
    bt = 4 if batch % 4 == 0 else (2 if batch % 2 == 0 else 1)

    # Output-channel tile under a vreg budget: the two f32 accumulators
    # (bt, to, mt) are kept <= ~16 vregs so the unrolled loop does not spill.
    acc_budget = 64 * 1024
    to = 8
    for cand in (64, 32, 16, 8):
        if op % cand == 0 and 2 * bt * cand * mt * 4 <= acc_budget:
            to = cand
            break
    while bt > 1 and 2 * bt * to * mt * 4 > acc_budget:
        bt //= 2

    # Bound the double-buffered streamed VMEM (bf16 weights + f32 x + f32 out).
    def stream_bytes(to_, mt_, bt_):
        w = 2 * 2 * in_ch * to_ * mt_ * 2     # real+imag, double-buffered, bf16
        x = 2 * 2 * bt_ * in_ch * mt_ * 4     # real+imag, double-buffered, f32
        o = 2 * 2 * bt_ * to_ * mt_ * 4
        return w + x + o

    while stream_bytes(to, mt, bt) > stream_budget and to > 8 and op % (to // 2) == 0:
        to //= 2
    while stream_bytes(to, mt, bt) > stream_budget and mt > 128:
        mt = 128 if (mt // 2) % 128 else mt // 2
        mp = ru(n_modes, mt)

    return mp, mt, op, to, bt, int(vmem_limit)


def _compl_mul_corners(xr, xi, wr, wi, mt, to, bt, vmem_limit):
    """xr/xi: (4, B, I, Mp) f32; wr/wi: (4, I, Op, Mp) bf16 -> (4, B, Op, Mp) f32 x2."""
    C4, B, I, Mp = xr.shape
    Op = wr.shape[2]
    # Batch innermost: the weight index_map is batch-independent, so the
    # resident weight tile is reused across all batch steps (no re-DMA).
    grid = (C4, Op // to, Mp // mt, B // bt)

    x_spec = pl.BlockSpec((None, bt, I, mt), lambda c, o, m, b: (c, b, 0, m))
    # TODO(synk): on v5e at batch=1 (weight-DMA-bound) pipeline_mode=pl.Buffered(3)
    # on the two weight specs would give one extra step of prefetch cover.
    w_spec = pl.BlockSpec((None, I, to, mt), lambda c, o, m, b: (c, 0, o, m))
    o_spec = pl.BlockSpec((None, bt, to, mt), lambda c, o, m, b: (c, b, o, m))

    out_r, out_i = pl.pallas_call(
        _corner_mix_kernel,
        out_shape=(
            jax.ShapeDtypeStruct((C4, B, Op, Mp), jnp.float32),
            jax.ShapeDtypeStruct((C4, B, Op, Mp), jnp.float32),
        ),
        grid_spec=pltpu.PrefetchScalarGridSpec(
            num_scalar_prefetch=0,
            grid=grid,
            in_specs=[x_spec, x_spec, w_spec, w_spec],
            out_specs=[o_spec, o_spec],
        ),
        compiler_params=pltpu.CompilerParams(
            # No reduction grid axis: every output block is written exactly
            # once, so all axes are parallel (feeds megacore / 2 TCs).
            dimension_semantics=("parallel", "parallel", "parallel", "parallel"),
            vmem_limit_bytes=vmem_limit,
        ),
    )(xr, xi, wr, wi)
    return out_r, out_i


def _pad_last(a, target):
    pad = target - a.shape[-1]
    if pad:
        a = jnp.pad(a, [(0, 0)] * (a.ndim - 1) + [(0, pad)])
    return a


def spectral_conv3d(x, w1, w2, w3, w4, modes1, modes2, modes3):
    """Forward pass of SpectralConv3d.

    x: (B, in_channels, X, Y, Z) float32
    w1..w4: (in_channels, out_channels, modes1, modes2, modes3) complex64
    returns: (B, out_channels, X, Y, Z) float32
    """
    B, I, X, Y, Z = x.shape
    O = w1.shape[1]
    m1, m2, m3 = modes1, modes2, modes3
    Zr = Z // 2 + 1
    M = m1 * m2 * m3

    # TODO(synk): rfftn/irfftn have no Pallas TPU primitive; computed in plain JAX.
    x_ft = jnp.fft.rfftn(x, axes=(-3, -2, -1))          # (B, I, X, Y, Zr) complex64

    corners = jnp.stack(
        [
            x_ft[:, :, :m1, :m2, :m3],
            x_ft[:, :, -m1:, :m2, :m3],
            x_ft[:, :, :m1, -m2:, :m3],
            x_ft[:, :, -m1:, -m2:, :m3],
        ],
        axis=0,
    )                                                    # (4, B, I, m1, m2, m3)
    weights = jnp.stack([w1, w2, w3, w4], axis=0)        # (4, I, O, m1, m2, m3)

    mp, mt, op, to, bt, vmem_limit = _choose_tiles(I, O, B, M, _vmem_capacity_bytes())

    xr = jnp.real(corners).reshape(4, B, I, M).astype(jnp.float32)
    xi = jnp.imag(corners).reshape(4, B, I, M).astype(jnp.float32)
    # bf16 weight storage halves weight HBM/VMEM bytes; f32 accumulation in-kernel.
    wr = jnp.real(weights).reshape(4, I, O, M).astype(jnp.bfloat16)
    wi = jnp.imag(weights).reshape(4, I, O, M).astype(jnp.bfloat16)

    # Lane-pad M (zero pad -> padded lanes multiply by zero and are sliced off).
    xr = _pad_last(xr, mp)
    xi = _pad_last(xi, mp)
    wr = _pad_last(wr, mp)
    wi = _pad_last(wi, mp)
    if op != O:
        pads = ((0, 0), (0, 0), (0, op - O), (0, 0))
        wr = jnp.pad(wr, pads)
        wi = jnp.pad(wi, pads)

    out_r, out_i = _compl_mul_corners(xr, xi, wr, wi, mt, to, bt, vmem_limit)
    if op != O or mp != M:
        out_r = out_r[:, :, :O, :M]
        out_i = out_i[:, :, :O, :M]
    out_c = jax.lax.complex(out_r, out_i).reshape(4, B, O, m1, m2, m3)

    # Note: PyTorch allocates out_ft with last dim Z, but irfftn(s=(X,Y,Z)) only
    # uses the first Z//2+1 entries; building it at Zr directly is identical.
    out_ft = jnp.zeros((B, O, X, Y, Zr), dtype=jnp.complex64)
    out_ft = out_ft.at[:, :, :m1, :m2, :m3].set(out_c[0])
    out_ft = out_ft.at[:, :, -m1:, :m2, :m3].set(out_c[1])
    out_ft = out_ft.at[:, :, :m1, -m2:, :m3].set(out_c[2])
    out_ft = out_ft.at[:, :, -m1:, -m2:, :m3].set(out_c[3])

    return jnp.fft.irfftn(out_ft, s=(X, Y, Z), axes=(-3, -2, -1)).astype(jnp.float32)


def _reference(x, w1, w2, w3, w4, m1, m2, m3):
    """Pure-JAX reference mirroring the PyTorch forward (full f32 math)."""
    B, I, X, Y, Z = x.shape
    O = w1.shape[1]
    Zr = Z // 2 + 1
    x_ft = jnp.fft.rfftn(x, axes=(-3, -2, -1))
    cm = lambda a, w: jnp.einsum(
        "bixyz,ioxyz->boxyz", a, w, precision=jax.lax.Precision.HIGHEST
    )
    out_ft = jnp.zeros((B, O, X, Y, Zr), dtype=jnp.complex64)
    out_ft = out_ft.at[:, :, :m1, :m2, :m3].set(cm(x_ft[:, :, :m1, :m2, :m3], w1))
    out_ft = out_ft.at[:, :, -m1:, :m2, :m3].set(cm(x_ft[:, :, -m1:, :m2, :m3], w2))
    out_ft = out_ft.at[:, :, :m1, -m2:, :m3].set(cm(x_ft[:, :, :m1, -m2:, :m3], w3))
    out_ft = out_ft.at[:, :, -m1:, -m2:, :m3].set(cm(x_ft[:, :, -m1:, -m2:, :m3], w4))
    return jnp.fft.irfftn(out_ft, s=(X, Y, Z), axes=(-3, -2, -1))


def _quantize_like_kernel(w):
    """Apply the same bf16 real/imag storage the kernel path uses."""
    wr = jnp.real(w).astype(jnp.bfloat16).astype(jnp.float32)
    wi = jnp.imag(w).astype(jnp.bfloat16).astype(jnp.float32)
    return (wr + 1j * wi).astype(jnp.complex64)


if __name__ == "__main__":
    # Small shapes consistent with the module.
    B, in_ch, out_ch = 2, 4, 4
    X, Y, Z = 8, 8, 8
    m1, m2, m3 = 4, 4, 3          # modes3 <= Z//2 + 1

    key = jax.random.PRNGKey(0)
    kx, *kw = jax.random.split(key, 9)
    x = jax.random.normal(kx, (B, in_ch, X, Y, Z), dtype=jnp.float32)

    scale = 1.0 / (in_ch * out_ch)
    wshape = (in_ch, out_ch, m1, m2, m3)

    def make_w(kr, ki):
        # torch.rand(..., dtype=cfloat): real & imag parts ~ U[0, 1)
        wr = jax.random.uniform(kr, wshape, dtype=jnp.float32)
        wi = jax.random.uniform(ki, wshape, dtype=jnp.float32)
        return (scale * (wr + 1j * wi)).astype(jnp.complex64)

    w1 = make_w(kw[0], kw[1])
    w2 = make_w(kw[2], kw[3])
    w3 = make_w(kw[4], kw[5])
    w4 = make_w(kw[6], kw[7])

    out = jax.block_until_ready(spectral_conv3d(x, w1, w2, w3, w4, m1, m2, m3))
    assert out.shape == (B, out_ch, X, Y, Z), out.shape

    # 1) Tight check against a reference using the same bf16-stored weights the
    #    kernel consumes (validates the Pallas arithmetic itself).
    wq = [_quantize_like_kernel(w) for w in (w1, w2, w3, w4)]
    ref_q = jax.block_until_ready(_reference(x, *wq, m1, m2, m3))
    assert jnp.allclose(out, ref_q, rtol=1e-3, atol=1e-5), float(
        jnp.max(jnp.abs(out - ref_q))
    )

    # 2) Loose check against the full-precision reference (bounds the impact of
    #    bf16 weight storage end-to-end).
    ref = jax.block_until_ready(_reference(x, w1, w2, w3, w4, m1, m2, m3))
    err = float(jnp.max(jnp.abs(out - ref)))
    ref_scale = float(jnp.max(jnp.abs(ref)))
    assert err <= 2e-2 * ref_scale + 1e-5, (err, ref_scale)

    print("KERNEL_OK")
</pallas_src>

<mosaic_0001>
module attributes {stable_mosaic.version = 11 : i64} {
  func.func @_corner_mix_kernel(%arg0: i32, %arg1: i32, %arg2: i32, %arg3: i32, %arg4: memref<1x2x4x128xf32, #tpu.memory_space<vmem>>, %arg5: memref<1x2x4x128xf32, #tpu.memory_space<vmem>>, %arg6: memref<1x4x8x128xbf16, #tpu.memory_space<vmem>>, %arg7: memref<1x4x8x128xbf16, #tpu.memory_space<vmem>>, %arg8: memref<1x2x8x128xf32, #tpu.memory_space<vmem>>, %arg9: memref<1x2x8x128xf32, #tpu.memory_space<vmem>>) attributes {dimension_semantics = [#tpu.dimension_semantics<parallel>, #tpu.dimension_semantics<parallel>, #tpu.dimension_semantics<parallel>, #tpu.dimension_semantics<parallel>], iteration_bounds = array<i64: 4, 1, 1, 1>, scalar_prefetch = 0 : i64, scratch_operands = 0 : i64, tpu.core_type = #tpu.core_type<tc>, window_params = [{transform_indices = @transform_0, window_bounds = array<i64: 1, 2, 4, 128>}, {transform_indices = @transform_1, window_bounds = array<i64: 1, 2, 4, 128>}, {transform_indices = @transform_2, window_bounds = array<i64: 1, 4, 8, 128>}, {transform_indices = @transform_3, window_bounds = array<i64: 1, 4, 8, 128>}, {transform_indices = @transform_4, window_bounds = array<i64: 1, 2, 8, 128>}, {transform_indices = @transform_5, window_bounds = array<i64: 1, 2, 8, 128>}]} {
    %cst = arith.constant 0.000000e+00 : f32
    %0 = vector.broadcast %cst : f32 to vector<8x128xf32>
    %c0_i32 = arith.constant 0 : i32
    %c0 = arith.constant 0 : index
    %1 = arith.index_cast %c0_i32 : i32 to index
    %c0_0 = arith.constant 0 : index
    %c0_1 = arith.constant 0 : index
    %2 = vector.load %arg6[%c0, %1, %c0_0, %c0_1] : memref<1x4x8x128xbf16, #tpu.memory_space<vmem>>, vector<1x1x8x128xbf16>
    %3 = vector.shape_cast %2 : vector<1x1x8x128xbf16> to vector<8x128xbf16>
    %4 = arith.extf %3 : vector<8x128xbf16> to vector<8x128xf32>
    %c0_2 = arith.constant 0 : index
    %5 = arith.index_cast %c0_i32 : i32 to index
    %c0_3 = arith.constant 0 : index
    %c0_4 = arith.constant 0 : index
    %6 = vector.load %arg7[%c0_2, %5, %c0_3, %c0_4] : memref<1x4x8x128xbf16, #tpu.memory_space<vmem>>, vector<1x1x8x128xbf16>
    %7 = vector.shape_cast %6 : vector<1x1x8x128xbf16> to vector<8x128xbf16>
    %8 = arith.extf %7 : vector<8x128xbf16> to vector<8x128xf32>
    %c0_5 = arith.constant 0 : index
    %c0_6 = arith.constant 0 : index
    %9 = arith.index_cast %c0_i32 : i32 to index
    %c0_7 = arith.constant 0 : index
    %10 = vector.load %arg4[%c0_5, %c0_6, %9, %c0_7] : memref<1x2x4x128xf32, #tpu.memory_space<vmem>>, vector<1x1x1x128xf32>
    %11 = vector.shape_cast %10 : vector<1x1x1x128xf32> to vector<1x128xf32>
    %12 = vector.shape_cast %11 : vector<1x128xf32> to vector<1x128xf32>
    %13 = vector.broadcast %12 : vector<1x128xf32> to vector<8x128xf32>
    %c0_8 = arith.constant 0 : index
    %c0_9 = arith.constant 0 : index
    %14 = arith.index_cast %c0_i32 : i32 to index
    %c0_10 = arith.constant 0 : index
    %15 = vector.load %arg5[%c0_8, %c0_9, %14, %c0_10] : memref<1x2x4x128xf32, #tpu.memory_space<vmem>>, vector<1x1x1x128xf32>
    %16 = vector.shape_cast %15 : vector<1x1x1x128xf32> to vector<1x128xf32>
    %17 = vector.shape_cast %16 : vector<1x128xf32> to vector<1x128xf32>
    %18 = vector.broadcast %17 : vector<1x128xf32> to vector<8x128xf32>
    %19 = arith.mulf %4, %13 : vector<8x128xf32>
    %20 = arith.mulf %8, %18 : vector<8x128xf32>
    %21 = arith.subf %19, %20 : vector<8x128xf32>
    %22 = arith.addf %0, %21 : vector<8x128xf32>
    %23 = arith.mulf %4, %18 : vector<8x128xf32>
    %24 = arith.mulf %8, %13 : vector<8x128xf32>
    %25 = arith.addf %23, %24 : vector<8x128xf32>
    %26 = arith.addf %0, %25 : vector<8x128xf32>
    %c0_11 = arith.constant 0 : index
    %c1 = arith.constant 1 : index
    %27 = arith.index_cast %c0_i32 : i32 to index
    %c0_12 = arith.constant 0 : index
    %28 = vector.load %arg4[%c0_11, %c1, %27, %c0_12] : memref<1x2x4x128xf32, #tpu.memory_space<vmem>>, vector<1x1x1x128xf32>
    %29 = vector.shape_cast %28 : vector<1x1x1x128xf32> to vector<1x128xf32>
    %30 = vector.shape_cast %29 : vector<1x128xf32> to vector<1x128xf32>
    %31 = vector.broadcast %30 : vector<1x128xf32> to vector<8x128xf32>
    %c0_13 = arith.constant 0 : index
    %c1_14 = arith.constant 1 : index
    %32 = arith.index_cast %c0_i32 : i32 to index
    %c0_15 = arith.constant 0 : index
    %33 = vector.load %arg5[%c0_13, %c1_14, %32, %c0_15] : memref<1x2x4x128xf32, #tpu.memory_space<vmem>>, vector<1x1x1x128xf32>
    %34 = vector.shape_cast %33 : vector<1x1x1x128xf32> to vector<1x128xf32>
    %35 = vector.shape_cast %34 : vector<1x128xf32> to vector<1x128xf32>
    %36 = vector.broadcast %35 : vector<1x128xf32> to vector<8x128xf32>
    %37 = arith.mulf %4, %31 : vector<8x128xf32>
    %38 = arith.mulf %8, %36 : vector<8x128xf32>
    %39 = arith.subf %37, %38 : vector<8x128xf32>
    %40 = arith.addf %0, %39 : vector<8x128xf32>
    %41 = arith.mulf %4, %36 : vector<8x128xf32>
    %42 = arith.mulf %8, %31 : vector<8x128xf32>
    %43 = arith.addf %41, %42 : vector<8x128xf32>
    %44 = arith.addf %0, %43 : vector<8x128xf32>
    %c1_i32 = arith.constant 1 : i32
    %c0_16 = arith.constant 0 : index
    %45 = arith.index_cast %c1_i32 : i32 to index
    %c0_17 = arith.constant 0 : index
    %c0_18 = arith.constant 0 : index
    %46 = vector.load %arg6[%c0_16, %45, %c0_17, %c0_18] : memref<1x4x8x128xbf16, #tpu.memory_space<vmem>>, vector<1x1x8x128xbf16>
    %47 = vector.shape_cast %46 : vector<1x1x8x128xbf16> to vector<8x128xbf16>
    %48 = arith.extf %47 : vector<8x128xbf16> to vector<8x128xf32>
    %c0_19 = arith.constant 0 : index
    %49 = arith.index_cast %c1_i32 : i32 to index
    %c0_20 = arith.constant 0 : index
    %c0_21 = arith.constant 0 : index
    %50 = vector.load %arg7[%c0_19, %49, %c0_20, %c0_21] : memref<1x4x8x128xbf16, #tpu.memory_space<vmem>>, vector<1x1x8x128xbf16>
    %51 = vector.shape_cast %50 : vector<1x1x8x128xbf16> to vector<8x128xbf16>
    %52 = arith.extf %51 : vector<8x128xbf16> to vector<8x128xf32>
    %c0_22 = arith.constant 0 : index
    %c0_23 = arith.constant 0 : index
    %53 = arith.index_cast %c1_i32 : i32 to index
    %c0_24 = arith.constant 0 : index
    %54 = vector.load %arg4[%c0_22, %c0_23, %53, %c0_24] : memref<1x2x4x128xf32, #tpu.memory_space<vmem>>, vector<1x1x1x128xf32>
    %55 = vector.shape_cast %54 : vector<1x1x1x128xf32> to vector<1x128xf32>
    %56 = vector.shape_cast %55 : vector<1x128xf32> to vector<1x128xf32>
    %57 = vector.broadcast %56 : vector<1x128xf32> to vector<8x128xf32>
    %c0_25 = arith.constant 0 : index
    %c0_26 = arith.constant 0 : index
    %58 = arith.index_cast %c1_i32 : i32 to index
    %c0_27 = arith.constant 0 : index
    %59 = vector.load %arg5[%c0_25, %c0_26, %58, %c0_27] : memref<1x2x4x128xf32, #tpu.memory_space<vmem>>, vector<1x1x1x128xf32>
    %60 = vector.shape_cast %59 : vector<1x1x1x128xf32> to vector<1x128xf32>
    %61 = vector.shape_cast %60 : vector<1x128xf32> to vector<1x128xf32>
    %62 = vector.broadcast %61 : vector<1x128xf32> to vector<8x128xf32>
    %63 = arith.mulf %48, %57 : vector<8x128xf32>
    %64 = arith.mulf %52, %62 : vector<8x128xf32>
    %65 = arith.subf %63, %64 : vector<8x128xf32>
    %66 = arith.addf %22, %65 : vector<8x128xf32>
    %67 = arith.mulf %48, %62 : vector<8x128xf32>
    %68 = arith.mulf %52, %57 : vector<8x128xf32>
    %69 = arith.addf %67, %68 : vector<8x128xf32>
    %70 = arith.addf %26, %69 : vector<8x128xf32>
    %c0_28 = arith.constant 0 : index
    %c1_29 = arith.constant 1 : index
    %71 = arith.index_cast %c1_i32 : i32 to index
    %c0_30 = arith.constant 0 : index
    %72 = vector.load %arg4[%c0_28, %c1_29, %71, %c0_30] : memref<1x2x4x128xf32, #tpu.memory_space<vmem>>, vector<1x1x1x128xf32>
    %73 = vector.shape_cast %72 : vector<1x1x1x128xf32> to vector<1x128xf32>
    %74 = vector.shape_cast %73 : vector<1x128xf32> to vector<1x128xf32>
    %75 = vector.broadcast %74 : vector<1x128xf32> to vector<8x128xf32>
    %c0_31 = arith.constant 0 : index
    %c1_32 = arith.constant 1 : index
    %76 = arith.index_cast %c1_i32 : i32 to index
    %c0_33 = arith.constant 0 : index
    %77 = vector.load %arg5[%c0_31, %c1_32, %76, %c0_33] : memref<1x2x4x128xf32, #tpu.memory_space<vmem>>, vector<1x1x1x128xf32>
    %78 = vector.shape_cast %77 : vector<1x1x1x128xf32> to vector<1x128xf32>
    %79 = vector.shape_cast %78 : vector<1x128xf32> to vector<1x128xf32>
    %80 = vector.broadcast %79 : vector<1x128xf32> to vector<8x128xf32>
    %81 = arith.mulf %48, %75 : vector<8x128xf32>
    %82 = arith.mulf %52, %80 : vector<8x128xf32>
    %83 = arith.subf %81, %82 : vector<8x128xf32>
    %84 = arith.addf %40, %83 : vector<8x128xf32>
    %85 = arith.mulf %48, %80 : vector<8x128xf32>
    %86 = arith.mulf %52, %75 : vector<8x128xf32>
    %87 = arith.addf %85, %86 : vector<8x128xf32>
    %88 = arith.addf %44, %87 : vector<8x128xf32>
    %c2_i32 = arith.constant 2 : i32
    %c0_34 = arith.constant 0 : index
    %89 = arith.index_cast %c2_i32 : i32 to index
    %c0_35 = arith.constant 0 : index
    %c0_36 = arith.constant 0 : index
    %90 = vector.load %arg6[%c0_34, %89, %c0_35, %c0_36] : memref<1x4x8x128xbf16, #tpu.memory_space<vmem>>, vector<1x1x8x128xbf16>
    %91 = vector.shape_cast %90 : vector<1x1x8x128xbf16> to vector<8x128xbf16>
    %92 = arith.extf %91 : vector<8x128xbf16> to vector<8x128xf32>
    %c0_37 = arith.constant 0 : index
    %93 = arith.index_cast %c2_i32 : i32 to index
    %c0_38 = arith.constant 0 : index
    %c0_39 = arith.constant 0 : index
    %94 = vector.load %arg7[%c0_37, %93, %c0_38, %c0_39] : memref<1x4x8x128xbf16, #tpu.memory_space<vmem>>, vector<1x1x8x128xbf16>
    %95 = vector.shape_cast %94 : vector<1x1x8x128xbf16> to vector<8x128xbf16>
    %96 = arith.extf %95 : vector<8x128xbf16> to vector<8x128xf32>
    %c0_40 = arith.constant 0 : index
    %c0_41 = arith.constant 0 : index
    %97 = arith.index_cast %c2_i32 : i32 to index
    %c0_42 = arith.constant 0 : index
    %98 = vector.load %arg4[%c0_40, %c0_41, %97, %c0_42] : memref<1x2x4x128xf32, #tpu.memory_space<vmem>>, vector<1x1x1x128xf32>
    %99 = vector.shape_cast %98 : vector<1x1x1x128xf32> to vector<1x128xf32>
    %100 = vector.shape_cast %99 : vector<1x128xf32> to vector<1x128xf32>
    %101 = vector.broadcast %100 : vector<1x128xf32> to vector<8x128xf32>
    %c0_43 = arith.constant 0 : index
    %c0_44 = arith.constant 0 : index
    %102 = arith.index_cast %c2_i32 : i32 to index
    %c0_45 = arith.constant 0 : index
    %103 = vector.load %arg5[%c0_43, %c0_44, %102, %c0_45] : memref<1x2x4x128xf32, #tpu.memory_space<vmem>>, vector<1x1x1x128xf32>
    %104 = vector.shape_cast %103 : vector<1x1x1x128xf32> to vector<1x128xf32>
    %105 = vector.shape_cast %104 : vector<1x128xf32> to vector<1x128xf32>
    %106 = vector.broadcast %105 : vector<1x128xf32> to vector<8x128xf32>
    %107 = arith.mulf %92, %101 : vector<8x128xf32>
    %108 = arith.mulf %96, %106 : vector<8x128xf32>
    %109 = arith.subf %107, %108 : vector<8x128xf32>
    %110 = arith.addf %66, %109 : vector<8x128xf32>
    %111 = arith.mulf %92, %106 : vector<8x128xf32>
    %112 = arith.mulf %96, %101 : vector<8x128xf32>
    %113 = arith.addf %111, %112 : vector<8x128xf32>
    %114 = arith.addf %70, %113 : vector<8x128xf32>
    %c0_46 = arith.constant 0 : index
    %c1_47 = arith.constant 1 : index
    %115 = arith.index_cast %c2_i32 : i32 to index
    %c0_48 = arith.constant 0 : index
    %116 = vector.load %arg4[%c0_46, %c1_47, %115, %c0_48] : memref<1x2x4x128xf32, #tpu.memory_space<vmem>>, vector<1x1x1x128xf32>
    %117 = vector.shape_cast %116 : vector<1x1x1x128xf32> to vector<1x128xf32>
    %118 = vector.shape_cast %117 : vector<1x128xf32> to vector<1x128xf32>
    %119 = vector.broadcast %118 : vector<1x128xf32> to vector<8x128xf32>
    %c0_49 = arith.constant 0 : index
    %c1_50 = arith.constant 1 : index
    %120 = arith.index_cast %c2_i32 : i32 to index
    %c0_51 = arith.constant 0 : index
    %121 = vector.load %arg5[%c0_49, %c1_50, %120, %c0_51] : memref<1x2x4x128xf32, #tpu.memory_space<vmem>>, vector<1x1x1x128xf32>
    %122 = vector.shape_cast %121 : vector<1x1x1x128xf32> to vector<1x128xf32>
    %123 = vector.shape_cast %122 : vector<1x128xf32> to vector<1x128xf32>
    %124 = vector.broadcast %123 : vector<1x128xf32> to vector<8x128xf32>
    %125 = arith.mulf %92, %119 : vector<8x128xf32>
    %126 = arith.mulf %96, %124 : vector<8x128xf32>
    %127 = arith.subf %125, %126 : vector<8x128xf32>
    %128 = arith.addf %84, %127 : vector<8x128xf32>
    %129 = arith.mulf %92, %124 : vector<8x128xf32>
    %130 = arith.mulf %96, %119 : vector<8x128xf32>
    %131 = arith.addf %129, %130 : vector<8x128xf32>
    %132 = arith.addf %88, %131 : vector<8x128xf32>
    %c3_i32 = arith.constant 3 : i32
    %c0_52 = arith.constant 0 : index
    %133 = arith.index_cast %c3_i32 : i32 to index
    %c0_53 = arith.constant 0 : index
    %c0_54 = arith.constant 0 : index
    %134 = vector.load %arg6[%c0_52, %133, %c0_53, %c0_54] : memref<1x4x8x128xbf16, #tpu.memory_space<vmem>>, vector<1x1x8x128xbf16>
    %135 = vector.shape_cast %134 : vector<1x1x8x128xbf16> to vector<8x128xbf16>
    %136 = arith.extf %135 : vector<8x128xbf16> to vector<8x128xf32>
    %c0_55 = arith.constant 0 : index
    %137 = arith.index_cast %c3_i32 : i32 to index
    %c0_56 = arith.constant 0 : index
    %c0_57 = arith.constant 0 : index
    %138 = vector.load %arg7[%c0_55, %137, %c0_56, %c0_57] : memref<1x4x8x128xbf16, #tpu.memory_space<vmem>>, vector<1x1x8x128xbf16>
    %139 = vector.shape_cast %138 : vector<1x1x8x128xbf16> to vector<8x128xbf16>
    %140 = arith.extf %139 : vector<8x128xbf16> to vector<8x128xf32>
    %c0_58 = arith.constant 0 : index
    %c0_59 = arith.constant 0 : index
    %141 = arith.index_cast %c3_i32 : i32 to index
    %c0_60 = arith.constant 0 : index
    %142 = vector.load %arg4[%c0_58, %c0_59, %141, %c0_60] : memref<1x2x4x128xf32, #tpu.memory_space<vmem>>, vector<1x1x1x128xf32>
    %143 = vector.shape_cast %142 : vector<1x1x1x128xf32> to vector<1x128xf32>
    %144 = vector.shape_cast %143 : vector<1x128xf32> to vector<1x128xf32>
    %145 = vector.broadcast %144 : vector<1x128xf32> to vector<8x128xf32>
    %c0_61 = arith.constant 0 : index
    %c0_62 = arith.constant 0 : index
    %146 = arith.index_cast %c3_i32 : i32 to index
    %c0_63 = arith.constant 0 : index
    %147 = vector.load %arg5[%c0_61, %c0_62, %146, %c0_63] : memref<1x2x4x128xf32, #tpu.memory_space<vmem>>, vector<1x1x1x128xf32>
    %148 = vector.shape_cast %147 : vector<1x1x1x128xf32> to vector<1x128xf32>
    %149 = vector.shape_cast %148 : vector<1x128xf32> to vector<1x128xf32>
    %150 = vector.broadcast %149 : vector<1x128xf32> to vector<8x128xf32>
    %151 = arith.mulf %136, %145 : vector<8x128xf32>
    %152 = arith.mulf %140, %150 : vector<8x128xf32>
    %153 = arith.subf %151, %152 : vector<8x128xf32>
    %154 = arith.addf %110, %153 : vector<8x128xf32>
    %155 = arith.mulf %136, %150 : vector<8x128xf32>
    %156 = arith.mulf %140, %145 : vector<8x128xf32>
    %157 = arith.addf %155, %156 : vector<8x128xf32>
    %158 = arith.addf %114, %157 : vector<8x128xf32>
    %c0_64 = arith.constant 0 : index
    %c1_65 = arith.constant 1 : index
    %159 = arith.index_cast %c3_i32 : i32 to index
    %c0_66 = arith.constant 0 : index
    %160 = vector.load %arg4[%c0_64, %c1_65, %159, %c0_66] : memref<1x2x4x128xf32, #tpu.memory_space<vmem>>, vector<1x1x1x128xf32>
    %161 = vector.shape_cast %160 : vector<1x1x1x128xf32> to vector<1x128xf32>
    %162 = vector.shape_cast %161 : vector<1x128xf32> to vector<1x128xf32>
    %163 = vector.broadcast %162 : vector<1x128xf32> to vector<8x128xf32>
    %c0_67 = arith.constant 0 : index
    %c1_68 = arith.constant 1 : index
    %164 = arith.index_cast %c3_i32 : i32 to index
    %c0_69 = arith.constant 0 : index
    %165 = vector.load %arg5[%c0_67, %c1_68, %164, %c0_69] : memref<1x2x4x128xf32, #tpu.memory_space<vmem>>, vector<1x1x1x128xf32>
    %166 = vector.shape_cast %165 : vector<1x1x1x128xf32> to vector<1x128xf32>
    %167 = vector.shape_cast %166 : vector<1x128xf32> to vector<1x128xf32>
    %168 = vector.broadcast %167 : vector<1x128xf32> to vector<8x128xf32>
    %169 = arith.mulf %136, %163 : vector<8x128xf32>
    %170 = arith.mulf %140, %168 : vector<8x128xf32>
    %171 = arith.subf %169, %170 : vector<8x128xf32>
    %172 = arith.addf %128, %171 : vector<8x128xf32>
    %173 = arith.mulf %136, %168 : vector<8x128xf32>
    %174 = arith.mulf %140, %163 : vector<8x128xf32>
    %175 = arith.addf %173, %174 : vector<8x128xf32>
    %176 = arith.addf %132, %175 : vector<8x128xf32>
    %c4_i32 = arith.constant 4 : i32
    %c0_70 = arith.constant 0 : index
    %c0_71 = arith.constant 0 : index
    %c0_72 = arith.constant 0 : index
    %c0_73 = arith.constant 0 : index
    %177 = vector.load %arg8[%c0_70, %c0_71, %c0_72, %c0_73] : memref<1x2x8x128xf32, #tpu.memory_space<vmem>>, vector<1x1x8x128xf32>
    %178 = vector.shape_cast %177 : vector<1x1x8x128xf32> to vector<8x128xf32>
    %179 = vector.shape_cast %154 : vector<8x128xf32> to vector<1x1x8x128xf32>
    tpu.vector_store %arg8[%c0_70, %c0_71, %c0_72, %c0_73], %179 {strides = array<i32>} : memref<1x2x8x128xf32, #tpu.memory_space<vmem>>, vector<1x1x8x128xf32>,
    %c0_74 = arith.constant 0 : index
    %c0_75 = arith.constant 0 : index
    %c0_76 = arith.constant 0 : index
    %c0_77 = arith.constant 0 : index
    %180 = vector.load %arg9[%c0_74, %c0_75, %c0_76, %c0_77] : memref<1x2x8x128xf32, #tpu.memory_space<vmem>>, vector<1x1x8x128xf32>
    %181 = vector.shape_cast %180 : vector<1x1x8x128xf32> to vector<8x128xf32>
    %182 = vector.shape_cast %158 : vector<8x128xf32> to vector<1x1x8x128xf32>
    tpu.vector_store %arg9[%c0_74, %c0_75, %c0_76, %c0_77], %182 {strides = array<i32>} : memref<1x2x8x128xf32, #tpu.memory_space<vmem>>, vector<1x1x8x128xf32>,
    %c0_78 = arith.constant 0 : index
    %c1_79 = arith.constant 1 : index
    %c0_80 = arith.constant 0 : index
    %c0_81 = arith.constant 0 : index
    %183 = vector.load %arg8[%c0_78, %c1_79, %c0_80, %c0_81] : memref<1x2x8x128xf32, #tpu.memory_space<vmem>>, vector<1x1x8x128xf32>
    %184 = vector.shape_cast %183 : vector<1x1x8x128xf32> to vector<8x128xf32>
    %185 = vector.shape_cast %172 : vector<8x128xf32> to vector<1x1x8x128xf32>
    tpu.vector_store %arg8[%c0_78, %c1_79, %c0_80, %c0_81], %185 {strides = array<i32>} : memref<1x2x8x128xf32, #tpu.memory_space<vmem>>, vector<1x1x8x128xf32>,
    %c0_82 = arith.constant 0 : index
    %c1_83 = arith.constant 1 : index
    %c0_84 = arith.constant 0 : index
    %c0_85 = arith.constant 0 : index
    %186 = vector.load %arg9[%c0_82, %c1_83, %c0_84, %c0_85] : memref<1x2x8x128xf32, #tpu.memory_space<vmem>>, vector<1x1x8x128xf32>
    %187 = vector.shape_cast %186 : vector<1x1x8x128xf32> to vector<8x128xf32>
    %188 = vector.shape_cast %176 : vector<8x128xf32> to vector<1x1x8x128xf32>
    tpu.vector_store %arg9[%c0_82, %c1_83, %c0_84, %c0_85], %188 {strides = array<i32>} : memref<1x2x8x128xf32, #tpu.memory_space<vmem>>, vector<1x1x8x128xf32>,
    return
  }
  func.func @transform_0(%arg0: i32, %arg1: i32, %arg2: i32, %arg3: i32) -> (i32, i32, i32, i32) {
    %c0_i32 = arith.constant 0 : i32
    %c0_i32_0 = arith.constant 0 : i32
    return %arg0, %arg3, %c0_i32, %arg2 : i32, i32, i32, i32
  }
  func.func @transform_1(%arg0: i32, %arg1: i32, %arg2: i32, %arg3: i32) -> (i32, i32, i32, i32) {
    %c0_i32 = arith.constant 0 : i32
    %c0_i32_0 = arith.constant 0 : i32
    return %arg0, %arg3, %c0_i32, %arg2 : i32, i32, i32, i32
  }
  func.func @transform_2(%arg0: i32, %arg1: i32, %arg2: i32, %arg3: i32) -> (i32, i32, i32, i32) {
    %c0_i32 = arith.constant 0 : i32
    %c0_i32_0 = arith.constant 0 : i32
    return %arg0, %c0_i32, %arg1, %arg2 : i32, i32, i32, i32
  }
  func.func @transform_3(%arg0: i32, %arg1: i32, %arg2: i32, %arg3: i32) -> (i32, i32, i32, i32) {
    %c0_i32 = arith.constant 0 : i32
    %c0_i32_0 = arith.constant 0 : i32
    return %arg0, %c0_i32, %arg1, %arg2 : i32, i32, i32, i32
  }
  func.func @transform_4(%arg0: i32, %arg1: i32, %arg2: i32, %arg3: i32) -> (i32, i32, i32, i32) {
    %c0_i32 = arith.constant 0 : i32
    return %arg0, %arg3, %arg1, %arg2 : i32, i32, i32, i32
  }
  func.func @transform_5(%arg0: i32, %arg1: i32, %arg2: i32, %arg3: i32) -> (i32, i32, i32, i32) {
    %c0_i32 = arith.constant 0 : i32
    return %arg0, %arg3, %arg1, %arg2 : i32, i32, i32, i32
  }
}

</mosaic_0001>

<llo_original>
// kernel: tpu_custom_call.1
$region0: #{tpu_custom_call.1}
  #allocation0 [shape = 'u32[]', space=smem, size = 0x4, offset = 0x4, fixed_abs, tag = 'smem constant byte address 0x4 - core index']
  #allocation1 [shape = 'u32[72,128]{1,0:T(1,128)}', space=vmem, size = 0x9000, scoped, tag = 'internal scratch']
  %s0 = inlined_call_operand.hbm [shape: f32[4,2,4,128], index: 0, kind: input, shape index: {}]
  %s1 = inlined_call_operand.hbm [shape: f32[4,2,4,128], index: 1, kind: input, shape index: {}]
  %s2 = inlined_call_operand.hbm [shape: bf16[4,4,8,128], index: 2, kind: input, shape index: {}]
  %s3 = inlined_call_operand.hbm [shape: bf16[4,4,8,128], index: 3, kind: input, shape index: {}]
  %s4 = inlined_call_operand.hbm [shape: f32[4,2,8,128], index: 4, kind: output, shape index: {0}]
  %s5 = inlined_call_operand.hbm [shape: f32[4,2,8,128], index: 5, kind: output, shape index: {1}]
  %6 = xla_tuple %s4, %s5
  %s7 = sld [smem:[#allocation0]]
  $region73: #{tpu_custom_call.1} parent=0
    _
  %s9 = ssub.s32 1, %s7
  %s10 = scalar_select 0, %s9, %s7
  $region1: #{tpu_custom_call.1} parent=0
    #allocation2 [shape = 'u8[8192]{0}', space=vmem, size = 0x2000, scoped, tag = 'input window, operand 0']
    #allocation3 [shape = 's32[2]{0}', space=sflag, size = 0x8, scoped, tag = 'scoped memory for tpu_custom_call.1']
    #allocation4 [shape = 's32[2]{0}', space=sflag, size = 0x8, scoped, tag = 'scoped memory for tpu_custom_call.1']
    #allocation5 [shape = 'u8[8192]{0}', space=vmem, size = 0x2000, scoped, tag = 'input window, operand 1']
    #allocation6 [shape = 's32[2]{0}', space=sflag, size = 0x8, scoped, tag = 'scoped memory for tpu_custom_call.1']
    #allocation7 [shape = 'u8[16384]{0}', space=vmem, size = 0x4000, scoped, tag = 'input window, operand 2']
    #allocation8 [shape = 'u8[16384]{0}', space=vmem, size = 0x4000, scoped, tag = 'input window, operand 3']
    #allocation9 [shape = 's32[2]{0}', space=sflag, size = 0x8, scoped, tag = 'scoped memory for tpu_custom_call.1']
    #allocation10 [shape = 'u8[16384]{0}', space=vmem, size = 0x4000, scoped, tag = 'output window, operand 0']
    #allocation11 [shape = 'u8[16384]{0}', space=vmem, size = 0x4000, scoped, tag = 'output window, operand 1']
    #allocation12 [shape = 's32[2]{0}', space=sflag, size = 0x8, scoped, tag = 'scoped memory for tpu_custom_call.1']
    %11 = vsyncpa [#allocation3], 0
    %s12 = scalar_lea.sflag [#allocation3], 1
    %13 = vsyncpa %s12, 0
    %14 = vsyncpa [#allocation6], 0
    %s15 = scalar_lea.sflag [#allocation6], 1
    %16 = vsyncpa %s15, 0
    %17 = vsyncpa [#allocation9], 0
    %s18 = scalar_lea.sflag [#allocation9], 1
    %19 = vsyncpa %s18, 0
    %20 = vsyncpa [#allocation4], 0
    %s21 = scalar_lea.sflag [#allocation4], 1
    %22 = vsyncpa %s21, 0
    %23 = vsyncpa [#allocation12], 0
    %s24 = scalar_lea.sflag [#allocation12], 1
    %25 = vsyncpa %s24, 0
    loop: start=0, step=1, limit=6
    $region2: #{tpu_custom_call.1} parent=1 // loop_pre_header
      _
    $region3: #{tpu_custom_call.1} parent=1 // loop_header
      %s27 = sphi 0, %s31
      %p28 = scmp.ge.s32.totalorder %s27, 6
      %s34 = sphi 0, %s60
      %s35 = sphi 0, %s56
      %s36 = sphi 0, %s52
      %s37 = sphi 0, %s48
      %s38 = sphi 0, %s34
      %s39 = sphi 0, %s35
      %s40 = sphi 0, %s36
      %s41 = sphi 0, %s37
      %s42 = sphi 0, %s38
      %s43 = sphi 0, %s39
      %s44 = sphi 0, %s40
      %s45 = sphi 0, %s41
      %s67 = sphi 0, %s69
      %s70 = sphi 0, %s67
      %s71 = sphi 0, %s70
      %s87 = sphi 0, %s71
      %s97 = sphi 0, %s99
      %s100 = sphi 0, %s97
      %s101 = sphi 0, %s100
      %s117 = sphi 0, %s101
      %s127 = sphi 0, %s129
      %s130 = sphi 0, %s127
      %s131 = sphi 0, %s130
      %s147 = sphi 0, %s131
      %s157 = sphi 0, %s159
      %s160 = sphi 0, %s157
      %s161 = sphi 0, %s160
      %s177 = sphi 0, %s161
      %s189 = sphi 0, %s191
      %s192 = sphi 0, %s189
      %s193 = sphi 0, %s192
      %s209 = sphi 0, %s193
      %s221 = sphi 0, %s223
      %s224 = sphi 0, %s221
      %s225 = sphi 0, %s224
      %s241 = sphi 0, %s225
    $region4: #{tpu_custom_call.1} parent=1 // loop_header_branch
      %30 = sbr.rel (%p28) target = $region8
    $region5: #{tpu_custom_call.1} parent=1 // loop_body
      %s32 = ssub.s32 %s27, 1
      %s33 = ssub.s32 %s27, 2
      %s46 = sadd.s32 1, %s37
      %p47 = scmp.ge.s32.totalorder %s46, 1
      %s48 = scalar_select %p47, 0, %s46
      %s49 = sadd.s32 1, %s36
      %s50 = scalar_select %p47, %s49, %s36
      %p51 = scmp.ge.s32.totalorder %s50, 1
      %s52 = scalar_select %p51, 0, %s50
      %s53 = sadd.s32 1, %s35
      %s54 = scalar_select %p51, %s53, %s35
      %p55 = scmp.ge.s32.totalorder %s54, 1
      %s56 = scalar_select %p55, 0, %s54
      %s57 = sadd.s32 1, %s34
      %s58 = scalar_select %p55, %s57, %s34
      %p59 = scmp.ge.s32.totalorder %s58, 4
      %s60 = scalar_select %p59, 0, %s58
      %s61 = ssub.s32 %s34, %s60
      %s62 = ssub.s32 %s37, %s48
      %s63 = sor.u32 %s61, %s62
      %s64 = ssub.s32 %s36, %s52
      %s65 = sor.u32 %s63, %s64
      %p66 = scmp.eq.s32.totalorder %s65, 0
      %s68 = sadd.s32 %s67, 1
      %s69 = scalar_select %p66, %s67, %s68
      %p72 = pneg %p66
      %p73 = scmp.eq.s32.totalorder %s27, 3
      %p74 = por %p72, %p73
      %p75 = scmp.ne.s32.totalorder %s67, %s70
      %p76 = scmp.eq.s32.totalorder %s27, 0
      %p77 = por %p75, %p76
      %p78 = scmp.ne.s32.totalorder %s67, %s70
      %p79 = scmp.eq.s32.totalorder %s32, 3
      %p80 = por %p78, %p79
      %p81 = scmp.ne.s32.totalorder %s70, %s71
      %p82 = scmp.eq.s32.totalorder %s32, 0
      %p83 = por %p81, %p82
      %p84 = scmp.ne.s32.totalorder %s70, %s71
      %p85 = scmp.eq.s32.totalorder %s33, 3
      %p86 = por %p84, %p85
      %p88 = scmp.ne.s32.totalorder %s71, %s87
      %p89 = scmp.eq.s32.totalorder %s33, 0
      %p90 = por %p88, %p89
      %s91 = ssub.s32 %s34, %s60
      %s92 = ssub.s32 %s37, %s48
      %s93 = sor.u32 %s91, %s92
      %s94 = ssub.s32 %s36, %s52
      %s95 = sor.u32 %s93, %s94
      %p96 = scmp.eq.s32.totalorder %s95, 0
      %s98 = sadd.s32 %s97, 1
      %s99 = scalar_select %p96, %s97, %s98
      %p102 = pneg %p96
      %p103 = scmp.eq.s32.totalorder %s27, 3
      %p104 = por %p102, %p103
      %p105 = scmp.ne.s32.totalorder %s97, %s100
      %p106 = scmp.eq.s32.totalorder %s27, 0
      %p107 = por %p105, %p106
      %p108 = scmp.ne.s32.totalorder %s97, %s100
      %p109 = scmp.eq.s32.totalorder %s32, 3
      %p110 = por %p108, %p109
      %p111 = scmp.ne.s32.totalorder %s100, %s101
      %p112 = scmp.eq.s32.totalorder %s32, 0
      %p113 = por %p111, %p112
      %p114 = scmp.ne.s32.totalorder %s100, %s101
      %p115 = scmp.eq.s32.totalorder %s33, 3
      %p116 = por %p114, %p115
      %p118 = scmp.ne.s32.totalorder %s101, %s117
      %p119 = scmp.eq.s32.totalorder %s33, 0
      %p120 = por %p118, %p119
      %s121 = ssub.s32 %s34, %s60
      %s122 = ssub.s32 %s35, %s56
      %s123 = sor.u32 %s121, %s122
      %s124 = ssub.s32 %s36, %s52
      %s125 = sor.u32 %s123, %s124
      %p126 = scmp.eq.s32.totalorder %s125, 0
      %s128 = sadd.s32 %s127, 1
      %s129 = scalar_select %p126, %s127, %s128
      %p132 = pneg %p126
      %p133 = scmp.eq.s32.totalorder %s27, 3
      %p134 = por %p132, %p133
      %p135 = scmp.ne.s32.totalorder %s127, %s130
      %p136 = scmp.eq.s32.totalorder %s27, 0
      %p137 = por %p135, %p136
      %p138 = scmp.ne.s32.totalorder %s127, %s130
      %p139 = scmp.eq.s32.totalorder %s32, 3
      %p140 = por %p138, %p139
      %p141 = scmp.ne.s32.totalorder %s130, %s131
      %p142 = scmp.eq.s32.totalorder %s32, 0
      %p143 = por %p141, %p142
      %p144 = scmp.ne.s32.totalorder %s130, %s131
      %p145 = scmp.eq.s32.totalorder %s33, 3
      %p146 = por %p144, %p145
      %p148 = scmp.ne.s32.totalorder %s131, %s147
      %p149 = scmp.eq.s32.totalorder %s33, 0
      %p150 = por %p148, %p149
      %s151 = ssub.s32 %s34, %s60
      %s152 = ssub.s32 %s35, %s56
      %s153 = sor.u32 %s151, %s152
      %s154 = ssub.s32 %s36, %s52
      %s155 = sor.u32 %s153, %s154
      %p156 = scmp.eq.s32.totalorder %s155, 0
      %s158 = sadd.s32 %s157, 1
      %s159 = scalar_select %p156, %s157, %s158
      %p162 = pneg %p156
      %p163 = scmp.eq.s32.totalorder %s27, 3
      %p164 = por %p162, %p163
      %p165 = scmp.ne.s32.totalorder %s157, %s160
      %p166 = scmp.eq.s32.totalorder %s27, 0
      %p167 = por %p165, %p166
      %p168 = scmp.ne.s32.totalorder %s157, %s160
      %p169 = scmp.eq.s32.totalorder %s32, 3
      %p170 = por %p168, %p169
      %p171 = scmp.ne.s32.totalorder %s160, %s161
      %p172 = scmp.eq.s32.totalorder %s32, 0
      %p173 = por %p171, %p172
      %p174 = scmp.ne.s32.totalorder %s160, %s161
      %p175 = scmp.eq.s32.totalorder %s33, 3
      %p176 = por %p174, %p175
      %p178 = scmp.ne.s32.totalorder %s161, %s177
      %p179 = scmp.eq.s32.totalorder %s33, 0
      %p180 = por %p178, %p179
      %s181 = ssub.s32 %s34, %s60
      %s182 = ssub.s32 %s37, %s48
      %s183 = sor.u32 %s181, %s182
      %s184 = ssub.s32 %s35, %s56
      %s185 = sor.u32 %s183, %s184
      %s186 = ssub.s32 %s36, %s52
      %s187 = sor.u32 %s185, %s186
      %p188 = scmp.eq.s32.totalorder %s187, 0
      %s190 = sadd.s32 %s189, 1
      %s191 = scalar_select %p188, %s189, %s190
      %p194 = pneg %p188
      %p195 = scmp.eq.s32.totalorder %s27, 3
      %p196 = por %p194, %p195
      %p197 = scmp.ne.s32.totalorder %s189, %s192
      %p198 = scmp.eq.s32.totalorder %s27, 0
      %p199 = por %p197, %p198
      %p200 = scmp.ne.s32.totalorder %s189, %s192
      %p201 = scmp.eq.s32.totalorder %s32, 3
      %p202 = por %p200, %p201
      %p203 = scmp.ne.s32.totalorder %s192, %s193
      %p204 = scmp.eq.s32.totalorder %s32, 0
      %p205 = por %p203, %p204
      %p206 = scmp.ne.s32.totalorder %s192, %s193
      %p207 = scmp.eq.s32.totalorder %s33, 3
      %p208 = por %p206, %p207
      %p210 = scmp.ne.s32.totalorder %s193, %s209
      %p211 = scmp.eq.s32.totalorder %s33, 0
      %p212 = por %p210, %p211
      %s213 = ssub.s32 %s34, %s60
      %s214 = ssub.s32 %s37, %s48
      %s215 = sor.u32 %s213, %s214
      %s216 = ssub.s32 %s35, %s56
      %s217 = sor.u32 %s215, %s216
      %s218 = ssub.s32 %s36, %s52
      %s219 = sor.u32 %s217, %s218
      %p220 = scmp.eq.s32.totalorder %s219, 0
      %s222 = sadd.s32 %s221, 1
      %s223 = scalar_select %p220, %s221, %s222
      %p226 = pneg %p220
      %p227 = scmp.eq.s32.totalorder %s27, 3
      %p228 = por %p226, %p227
      %p229 = scmp.ne.s32.totalorder %s221, %s224
      %p230 = scmp.eq.s32.totalorder %s27, 0
      %p231 = por %p229, %p230
      %p232 = scmp.ne.s32.totalorder %s221, %s224
      %p233 = scmp.eq.s32.totalorder %s32, 3
      %p234 = por %p232, %p233
      %p235 = scmp.ne.s32.totalorder %s224, %s225
      %p236 = scmp.eq.s32.totalorder %s32, 0
      %p237 = por %p235, %p236
      %p238 = scmp.ne.s32.totalorder %s224, %s225
      %p239 = scmp.eq.s32.totalorder %s33, 3
      %p240 = por %p238, %p239
      %p242 = scmp.ne.s32.totalorder %s225, %s241
      %p243 = scmp.eq.s32.totalorder %s33, 0
      %p244 = por %p242, %p243
      %p245 = scmp.le.s32.totalorder 1, %s27
      %p246 = scmp.lt.s32.totalorder %s27, 5
      %p247 = pnand %p245, %p246
      %p248 = pneg %p247
      // Predicated region
      $region9: #{tpu_custom_call.1} parent=5 // pred_check
        _
      $region10: #{tpu_custom_call.1} parent=5 // pred_check_branch
        %250 = sbr.rel (%p247) target = $region12
      $region11: #{tpu_custom_call.1} parent=5 // pred_region
        %s251 = ssub.s32 %s27, 1
      $region12: #{tpu_custom_call.1} parent=5 // pred_fallthru
        _
      %p252 = scmp.lt.s32.totalorder %s27, 4
      // Predicated region
      $region13: #{tpu_custom_call.1} parent=5 // pred_check
        %p253 = pneg %p252
      $region14: #{tpu_custom_call.1} parent=5 // pred_check_branch
        %255 = sbr.rel (%p253) target = $region16
      $region15: #{tpu_custom_call.1} parent=5 // pred_region
        // Predicated region
        $region17: #{tpu_custom_call.1} parent=15 // pred_check
          %p256 = pneg %p77
        $region18: #{tpu_custom_call.1} parent=15 // pred_check_branch
          %258 = sbr.rel (%p256) target = $region20
        $region19: #{tpu_custom_call.1} parent=15 // pred_region
          %s259 = sand.u32 %s67, 1
          %s260 = scalar_lea.sflag [#allocation3], %s259
          %s261 = sand.u32 %s67, 1
          %s262 = smul.addr %s261, 8
          %s263 = scalar_lea.vmem [#allocation2], %s262
          %s264 = smul.u32 2, %s37
          %266 = vsyncadd %s260, 0
          %s267 = sadd.s32 %s36, %s264
          %s268 = smul.addr %s34, 2
          %s269 = sadd.s32 %s267, %s268
          %s270 = smul.addr %s269, 4
          %s271 = scalar_lea.hbm %s0, %s270
          %s272 = sshll.u32 %s271, 4
          %s273 = int_to_ptr.hbm [resolvable:$true] %s272
          %s274 = sshll.u32 %s263, 4
          %s275 = int_to_ptr.vmem [resolvable:$true] %s274
          %280 = dma.hbm_to_vmem [thread:$0]  %s273, 128, %s275, %s260, 64, 64, 4
        $region20: #{tpu_custom_call.1} parent=15 // pred_fallthru
          _
        // Predicated region
        $region21: #{tpu_custom_call.1} parent=15 // pred_check
          %p281 = pneg %p107
        $region22: #{tpu_custom_call.1} parent=15 // pred_check_branch
          %283 = sbr.rel (%p281) target = $region24
        $region23: #{tpu_custom_call.1} parent=15 // pred_region
          %s284 = sand.u32 %s27, 1
          %s285 = scalar_lea.sflag [#allocation6], %s284
          %s286 = sand.u32 %s97, 1
          %s287 = smul.addr %s286, 8
          %s288 = scalar_lea.vmem [#allocation5], %s287
          %s289 = smul.u32 2, %s37
          %291 = vsyncadd %s285, 0
          %s292 = sadd.s32 %s36, %s289
          %s293 = smul.addr %s34, 2
          %s294 = sadd.s32 %s292, %s293
          %s295 = smul.addr %s294, 4
          %s296 = scalar_lea.hbm %s1, %s295
          %s297 = sshll.u32 %s296, 4
          %s298 = int_to_ptr.hbm [resolvable:$true] %s297
          %s299 = sshll.u32 %s288, 4
          %s300 = int_to_ptr.vmem [resolvable:$true] %s299
          %305 = dma.hbm_to_vmem [thread:$0]  %s298, 128, %s300, %s285, 64, 64, 4
        $region24: #{tpu_custom_call.1} parent=15 // pred_fallthru
          _
        // Predicated region
        $region25: #{tpu_custom_call.1} parent=15 // pred_check
          %p306 = pneg %p137
        $region26: #{tpu_custom_call.1} parent=15 // pred_check_branch
          %308 = sbr.rel (%p306) target = $region28
        $region27: #{tpu_custom_call.1} parent=15 // pred_region
          %s309 = sand.u32 %s27, 1
          %s310 = scalar_lea.sflag [#allocation6], %s309
          %s311 = sand.u32 %s127, 1
          %s312 = smul.addr %s311, 16
          %s313 = scalar_lea.vmem [#allocation7], %s312
          %315 = vsyncadd %s310, 0
          %s316 = sadd.s32 %s36, %s35
          %s317 = smul.addr %s34, 4
          %s318 = sadd.s32 %s316, %s317
          %s319 = smul.addr %s318, 4
          %s320 = scalar_lea.hbm %s2, %s319
          %s321 = sshll.u32 %s320, 4
          %s322 = int_to_ptr.hbm [resolvable:$true] %s321
          %s323 = sshll.u32 %s313, 4
          %s324 = int_to_ptr.vmem [resolvable:$true] %s323
          %329 = dma.hbm_to_vmem [thread:$0]  %s322, 256, %s324, %s310, 64, 64, 4
        $region28: #{tpu_custom_call.1} parent=15 // pred_fallthru
          _
        // Predicated region
        $region29: #{tpu_custom_call.1} parent=15 // pred_check
          %p330 = pneg %p167
        $region30: #{tpu_custom_call.1} parent=15 // pred_check_branch
          %332 = sbr.rel (%p330) target = $region32
        $region31: #{tpu_custom_call.1} parent=15 // pred_region
          %s333 = sand.u32 %s157, 1
          %s334 = scalar_lea.sflag [#allocation9], %s333
          %s335 = sand.u32 %s157, 1
          %s336 = smul.addr %s335, 16
          %s337 = scalar_lea.vmem [#allocation8], %s336
          %339 = vsyncadd %s334, 0
          %s340 = sadd.s32 %s36, %s35
          %s341 = smul.addr %s34, 4
          %s342 = sadd.s32 %s340, %s341
          %s343 = smul.addr %s342, 4
          %s344 = scalar_lea.hbm %s3, %s343
          %s345 = sshll.u32 %s344, 4
          %s346 = int_to_ptr.hbm [resolvable:$true] %s345
          %s347 = sshll.u32 %s337, 4
          %s348 = int_to_ptr.vmem [resolvable:$true] %s347
          %353 = dma.hbm_to_vmem [thread:$0]  %s346, 256, %s348, %s334, 64, 64, 4
        $region32: #{tpu_custom_call.1} parent=15 // pred_fallthru
          _
      $region16: #{tpu_custom_call.1} parent=5 // pred_fallthru
        _
      %p354 = scmp.le.s32.totalorder 1, %s27
      %p355 = scmp.lt.s32.totalorder %s27, 5
      %p356 = pnand %p354, %p355
      %p357 = pneg %p356
      // Predicated region
      $region33: #{tpu_custom_call.1} parent=5 // pred_check
        _
      $region34: #{tpu_custom_call.1} parent=5 // pred_check_branch
        %359 = sbr.rel (%p356) target = $region36
      $region35: #{tpu_custom_call.1} parent=5 // pred_region
        %s360 = ssub.s32 %s27, 1
        %s361 = sand.u32 %s70, 1
        %s362 = scalar_lea.sflag [#allocation3], %s361
        %s363 = sand.u32 %s70, 1
        %s364 = smul.addr %s363, 8
        %s365 = scalar_lea.vmem [#allocation2], %s364
        // Predicated region
        $region37: #{tpu_custom_call.1} parent=35 // pred_check
          %p366 = pneg %p83
        $region38: #{tpu_custom_call.1} parent=35 // pred_check_branch
          %368 = sbr.rel (%p366) target = $region40
        $region39: #{tpu_custom_call.1} parent=35 // pred_region
          %370 = dma.done %s362, 128
        $region40: #{tpu_custom_call.1} parent=35 // pred_fallthru
          _
        %s371 = sand.u32 %s32, 1
        %s372 = scalar_lea.sflag [#allocation6], %s371
        %s373 = sand.u32 %s100, 1
        %s374 = smul.addr %s373, 8
        %s375 = scalar_lea.vmem [#allocation5], %s374
        // Predicated region
        $region41: #{tpu_custom_call.1} parent=35 // pred_check
          %p376 = pneg %p113
        $region42: #{tpu_custom_call.1} parent=35 // pred_check_branch
          %378 = sbr.rel (%p376) target = $region44
        $region43: #{tpu_custom_call.1} parent=35 // pred_region
          %380 = dma.done %s372, 128
        $region44: #{tpu_custom_call.1} parent=35 // pred_fallthru
          _
        %s381 = sand.u32 %s32, 1
        %s382 = scalar_lea.sflag [#allocation6], %s381
        %s383 = sand.u32 %s130, 1
        %s384 = smul.addr %s383, 16
        %s385 = scalar_lea.vmem [#allocation7], %s384
        // Predicated region
        $region45: #{tpu_custom_call.1} parent=35 // pred_check
          %p386 = pneg %p143
        $region46: #{tpu_custom_call.1} parent=35 // pred_check_branch
          %388 = sbr.rel (%p386) target = $region48
        $region47: #{tpu_custom_call.1} parent=35 // pred_region
          %390 = dma.done %s382, 256
        $region48: #{tpu_custom_call.1} parent=35 // pred_fallthru
          _
        %s391 = sand.u32 %s160, 1
        %s392 = scalar_lea.sflag [#allocation9], %s391
        %s393 = sand.u32 %s160, 1
        %s394 = smul.addr %s393, 16
        %s395 = scalar_lea.vmem [#allocation8], %s394
        // Predicated region
        $region49: #{tpu_custom_call.1} parent=35 // pred_check
          %p396 = pneg %p173
        $region50: #{tpu_custom_call.1} parent=35 // pred_check_branch
          %398 = sbr.rel (%p396) target = $region52
        $region51: #{tpu_custom_call.1} parent=35 // pred_region
          %400 = dma.done %s392, 256
        $region52: #{tpu_custom_call.1} parent=35 // pred_fallthru
          _
        %s401 = sand.u32 %s70, 1
        %s402 = scalar_lea.sflag [#allocation3], %s401
        %s403 = sand.u32 %s70, 1
        %s404 = smul.addr %s403, 8
        %s405 = scalar_lea.vmem [#allocation2], %s404
        %p406 = pneg %p83
        %p407 = pneg %p80
        %s408 = sand.u32 %s32, 1
        %s409 = scalar_lea.sflag [#allocation6], %s408
        %s410 = sand.u32 %s100, 1
        %s411 = smul.addr %s410, 8
        %s412 = scalar_lea.vmem [#allocation5], %s411
        %p413 = pneg %p113
        %p414 = pneg %p110
        %s415 = sand.u32 %s32, 1
        %s416 = scalar_lea.sflag [#allocation6], %s415
        %s417 = sand.u32 %s130, 1
        %s418 = smul.addr %s417, 16
        %s419 = scalar_lea.vmem [#allocation7], %s418
        %p420 = pneg %p143
        %p421 = pneg %p140
        %s422 = sand.u32 %s160, 1
        %s423 = scalar_lea.sflag [#allocation9], %s422
        %s424 = sand.u32 %s160, 1
        %s425 = smul.addr %s424, 16
        %s426 = scalar_lea.vmem [#allocation8], %s425
        %p427 = pneg %p173
        %p428 = pneg %p170
        %p429 = pneg %p205
        %p430 = pneg %p202
        %s431 = sand.u32 %s192, 1
        %s432 = scalar_lea.sflag [#allocation4], %s431
        %s433 = sand.u32 %s192, 1
        %s434 = smul.addr %s433, 16
        %s435 = scalar_lea.vmem [#allocation10], %s434
        %p436 = pneg %p237
        %p437 = pneg %p234
        %s438 = sand.u32 %s224, 1
        %s439 = scalar_lea.sflag [#allocation12], %s438
        %s440 = sand.u32 %s224, 1
        %s441 = smul.addr %s440, 16
        %s442 = scalar_lea.vmem [#allocation11], %s441
        %s443 = smul.u32 2, %s41
        %s444 = smul.u32 2, %s41
        %s445 = smul.u32 2, %s41
        %s446 = smul.u32 2, %s41
        %v447 = vld [vmem:[%s385] sm:$0xf]
        %v448 = vunpack.c.l.bf16 %v447
        %v449 = vld [vmem:[%s395] sm:$0xf]
        %v450 = vunpack.c.l.bf16 %v449
        %v451 = vld [vmem:[%s365] sm:$0x1]
        %v452 = vperm.slane %v451, 0
        %v453 = vld [vmem:[%s375] sm:$0x1]
        %v454 = vperm.slane %v453, 0
        %v455 = vmul.f32 %v448, %v452
        %v456 = vmul.f32 %v450, %v454
        %v457 = vsub.f32 %v455, %v456
        %v458 = vadd.f32 %v457, 0.0
        %v459 = vmul.f32 %v448, %v454
        %v460 = vmul.f32 %v450, %v452
        %v461 = vadd.f32 %v459, %v460
        %v462 = vadd.f32 %v461, 0.0
        %s463 = scalar_lea.vmem %s365, 4 [#allocation2]
        %v464 = vld [vmem:[%s463] sm:$0x1]
        %v465 = vperm.slane %v464, 0
        %s466 = scalar_lea.vmem %s375, 4 [#allocation5]
        %v467 = vld [vmem:[%s466] sm:$0x1]
        %v468 = vperm.slane %v467, 0
        %v469 = vmul.f32 %v448, %v465
        %v470 = vmul.f32 %v450, %v468
        %v471 = vsub.f32 %v469, %v470
        %v472 = vadd.f32 %v471, 0.0
        %v473 = vmul.f32 %v448, %v468
        %v474 = vmul.f32 %v450, %v465
        %v475 = vadd.f32 %v473, %v474
        %v476 = vadd.f32 %v475, 0.0
        %s477 = scalar_lea.vmem %s385, 4 [#allocation7]
        %v478 = vld [vmem:[%s477] sm:$0xf]
        %v479 = vunpack.c.l.bf16 %v478
        %s480 = scalar_lea.vmem %s395, 4 [#allocation8]
        %v481 = vld [vmem:[%s480] sm:$0xf]
        %v482 = vunpack.c.l.bf16 %v481
        %v483 = vld [vmem:[%s365 + $0x1] sm:$0x1]
        %v484 = vperm.slane %v483, 0
        %v485 = vld [vmem:[%s375 + $0x1] sm:$0x1]
        %v486 = vperm.slane %v485, 0
        %v487 = vmul.f32 %v479, %v484
        %v488 = vmul.f32 %v482, %v486
        %v489 = vsub.f32 %v487, %v488
        %v490 = vadd.f32 %v458, %v489
        %v491 = vmul.f32 %v479, %v486
        %v492 = vmul.f32 %v482, %v484
        %v493 = vadd.f32 %v491, %v492
        %v494 = vadd.f32 %v462, %v493
        %v495 = vld [vmem:[%s463 + $0x1] sm:$0x1]
        %v496 = vperm.slane %v495, 0
        %v497 = vld [vmem:[%s466 + $0x1] sm:$0x1]
        %v498 = vperm.slane %v497, 0
        %v499 = vmul.f32 %v479, %v496
        %v500 = vmul.f32 %v482, %v498
        %v501 = vsub.f32 %v499, %v500
        %v502 = vadd.f32 %v472, %v501
        %v503 = vmul.f32 %v479, %v498
        %v504 = vmul.f32 %v482, %v496
        %v505 = vadd.f32 %v503, %v504
        %v506 = vadd.f32 %v476, %v505
        %s507 = scalar_lea.vmem %s385, 8 [#allocation7]
        %v508 = vld [vmem:[%s507] sm:$0xf]
        %v509 = vunpack.c.l.bf16 %v508
        %s510 = scalar_lea.vmem %s395, 8 [#allocation8]
        %v511 = vld [vmem:[%s510] sm:$0xf]
        %v512 = vunpack.c.l.bf16 %v511
        %v513 = vld [vmem:[%s365 + $0x2] sm:$0x1]
        %v514 = vperm.slane %v513, 0
        %v515 = vld [vmem:[%s375 + $0x2] sm:$0x1]
        %v516 = vperm.slane %v515, 0
        %v517 = vmul.f32 %v509, %v514
        %v518 = vmul.f32 %v512, %v516
        %v519 = vsub.f32 %v517, %v518
        %v520 = vadd.f32 %v490, %v519
        %v521 = vmul.f32 %v509, %v516
        %v522 = vmul.f32 %v512, %v514
        %v523 = vadd.f32 %v521, %v522
        %v524 = vadd.f32 %v494, %v523
        %v525 = vld [vmem:[%s463 + $0x2] sm:$0x1]
        %v526 = vperm.slane %v525, 0
        %v527 = vld [vmem:[%s466 + $0x2] sm:$0x1]
        %v528 = vperm.slane %v527, 0
        %v529 = vmul.f32 %v509, %v526
        %v530 = vmul.f32 %v512, %v528
        %v531 = vsub.f32 %v529, %v530
        %v532 = vadd.f32 %v502, %v531
        %v533 = vmul.f32 %v509, %v528
        %v534 = vmul.f32 %v512, %v526
        %v535 = vadd.f32 %v533, %v534
        %v536 = vadd.f32 %v506, %v535
        %s537 = scalar_lea.vmem %s385, 12 [#allocation7]
        %v538 = vld [vmem:[%s537] sm:$0xf]
        %v539 = vunpack.c.l.bf16 %v538
        %s540 = scalar_lea.vmem %s395, 12 [#allocation8]
        %v541 = vld [vmem:[%s540] sm:$0xf]
        %v542 = vunpack.c.l.bf16 %v541
        %v543 = vld [vmem:[%s365 + $0x3] sm:$0x1]
        %v544 = vperm.slane %v543, 0
        %v545 = vld [vmem:[%s375 + $0x3] sm:$0x1]
        %v546 = vperm.slane %v545, 0
        %v547 = vmul.f32 %v539, %v544
        %v548 = vmul.f32 %v542, %v546
        %v549 = vsub.f32 %v547, %v548
        %v550 = vadd.f32 %v520, %v549
        %v551 = vmul.f32 %v539, %v546
        %v552 = vmul.f32 %v542, %v544
        %v553 = vadd.f32 %v551, %v552
        %v554 = vadd.f32 %v524, %v553
        %v555 = vld [vmem:[%s463 + $0x3] sm:$0x1]
        %v556 = vperm.slane %v555, 0
        %v557 = vld [vmem:[%s466 + $0x3] sm:$0x1]
        %v558 = vperm.slane %v557, 0
        %v559 = vmul.f32 %v539, %v556
        %v560 = vmul.f32 %v542, %v558
        %v561 = vsub.f32 %v559, %v560
        %v562 = vadd.f32 %v532, %v561
        %v563 = vmul.f32 %v539, %v558
        %v564 = vmul.f32 %v542, %v556
        %v565 = vadd.f32 %v563, %v564
        %v566 = vadd.f32 %v536, %v565
        %567 = vst [vmem:[%s435] sm:$0xff] %v550
        %568 = vst [vmem:[%s442] sm:$0xff] %v554
        %s569 = scalar_lea.vmem %s435, 8 [#allocation10]
        %570 = vst [vmem:[%s569] sm:$0xff] %v562
        %s571 = scalar_lea.vmem %s442, 8 [#allocation11]
        %572 = vst [vmem:[%s571] sm:$0xff] %v566
        %s573 = sand.u32 %s192, 1
        %s574 = scalar_lea.sflag [#allocation4], %s573
        %s575 = sand.u32 %s192, 1
        %s576 = smul.addr %s575, 16
        %s577 = scalar_lea.vmem [#allocation10], %s576
        %s578 = sand.u32 %s224, 1
        %s579 = scalar_lea.sflag [#allocation12], %s578
        %s580 = sand.u32 %s224, 1
        %s581 = smul.addr %s580, 16
        %s582 = scalar_lea.vmem [#allocation11], %s581
        // Predicated region
        $region53: #{tpu_custom_call.1} parent=35 // pred_check
          %p583 = pneg %p202
        $region54: #{tpu_custom_call.1} parent=35 // pred_check_branch
          %585 = sbr.rel (%p583) target = $region56
        $region55: #{tpu_custom_call.1} parent=35 // pred_region
          %s586 = smul.u32 2, %s41
          %588 = vsyncadd %s574, 0
          %s589 = sadd.s32 %s40, %s39
          %s590 = sadd.s32 %s589, %s586
          %s591 = smul.addr %s38, 2
          %s592 = sadd.s32 %s590, %s591
          %s593 = smul.addr %s592, 8
          %s594 = scalar_lea.hbm %s4, %s593
          %s595 = sshll.u32 %s577, 4
          %s596 = int_to_ptr.vmem [resolvable:$true] %s595
          %s597 = sshll.u32 %s594, 4
          %s598 = int_to_ptr.hbm [resolvable:$true] %s597
          %603 = dma.vmem_to_hbm [thread:$0]  %s596, 256, %s598, %s574, 128, 128, 8
        $region56: #{tpu_custom_call.1} parent=35 // pred_fallthru
          _
        // Predicated region
        $region57: #{tpu_custom_call.1} parent=35 // pred_check
          %p604 = pneg %p234
        $region58: #{tpu_custom_call.1} parent=35 // pred_check_branch
          %606 = sbr.rel (%p604) target = $region60
        $region59: #{tpu_custom_call.1} parent=35 // pred_region
          %s607 = smul.u32 2, %s41
          %609 = vsyncadd %s579, 0
          %s610 = sadd.s32 %s40, %s39
          %s611 = sadd.s32 %s610, %s607
          %s612 = smul.addr %s38, 2
          %s613 = sadd.s32 %s611, %s612
          %s614 = smul.addr %s613, 8
          %s615 = scalar_lea.hbm %s5, %s614
          %s616 = sshll.u32 %s582, 4
          %s617 = int_to_ptr.vmem [resolvable:$true] %s616
          %s618 = sshll.u32 %s615, 4
          %s619 = int_to_ptr.hbm [resolvable:$true] %s618
          %624 = dma.vmem_to_hbm [thread:$0]  %s617, 256, %s619, %s579, 128, 128, 8
        $region60: #{tpu_custom_call.1} parent=35 // pred_fallthru
          _
      $region36: #{tpu_custom_call.1} parent=5 // pred_fallthru
        _
      %p625 = scmp.le.s32.totalorder 2, %s27
      // Predicated region
      $region61: #{tpu_custom_call.1} parent=5 // pred_check
        %p626 = pneg %p625
      $region62: #{tpu_custom_call.1} parent=5 // pred_check_branch
        %628 = sbr.rel (%p626) target = $region64
      $region63: #{tpu_custom_call.1} parent=5 // pred_region
        %s629 = ssub.s32 %s27, 2
        // Predicated region
        $region65: #{tpu_custom_call.1} parent=63 // pred_check
          %p630 = pneg %p208
        $region66: #{tpu_custom_call.1} parent=63 // pred_check_branch
          %632 = sbr.rel (%p630) target = $region68
        $region67: #{tpu_custom_call.1} parent=63 // pred_region
          %s633 = sand.u32 %s193, 1
          %s634 = scalar_lea.sflag [#allocation4], %s633
          %s635 = sand.u32 %s193, 1
          %s636 = smul.addr %s635, 16
          %s637 = scalar_lea.vmem [#allocation10], %s636
          %639 = dma.done %s634, 256
        $region68: #{tpu_custom_call.1} parent=63 // pred_fallthru
          _
        // Predicated region
        $region69: #{tpu_custom_call.1} parent=63 // pred_check
          %p640 = pneg %p240
        $region70: #{tpu_custom_call.1} parent=63 // pred_check_branch
          %642 = sbr.rel (%p640) target = $region72
        $region71: #{tpu_custom_call.1} parent=63 // pred_region
          %s643 = sand.u32 %s225, 1
          %s644 = scalar_lea.sflag [#allocation12], %s643
          %s645 = sand.u32 %s225, 1
          %s646 = smul.addr %s645, 16
          %s647 = scalar_lea.vmem [#allocation11], %s646
          %649 = dma.done %s644, 256
        $region72: #{tpu_custom_call.1} parent=63 // pred_fallthru
          _
      $region64: #{tpu_custom_call.1} parent=5 // pred_fallthru
        _
    $region6: #{tpu_custom_call.1} parent=1 // loop_footer
      %s31 = sadd.s32 1, %s27
    $region7: #{tpu_custom_call.1} parent=1 // loop_footer_branch
      %26 = sbr.rel target = $region3
    $region8: #{tpu_custom_call.1} parent=1 // loop_exit
      _
    %650 = vsyncpa [#allocation3], 1
    %s651 = scalar_lea.sflag [#allocation3], 1
    %652 = vsyncpa %s651, 1
    %653 = vsyncpa [#allocation6], 1
    %s654 = scalar_lea.sflag [#allocation6], 1
    %655 = vsyncpa %s654, 1
    %656 = vsyncpa [#allocation9], 1
    %s657 = scalar_lea.sflag [#allocation9], 1
    %658 = vsyncpa %s657, 1
    %659 = vsyncpa [#allocation4], 1
    %s660 = scalar_lea.sflag [#allocation4], 1
    %661 = vsyncpa %s660, 1
    %662 = vsyncpa [#allocation12], 1
    %s663 = scalar_lea.sflag [#allocation12], 1
    %664 = vsyncpa %s663, 1

</llo_original>
